<compile_context>
chip_gen: v6e
topology: v6e:2x2x1
jax: 0.10.0
libtpu: 0.0.40
codegen_flags: <defaults>
</compile_context>

<pallas_src>
import jax
import jax.numpy as jnp
from jax import lax
from jax.experimental import pallas as pl
from jax.experimental.pallas import tpu as pltpu


def frozen_bn_kernel(x_ref, ss_ref, o_ref):
    # x_ref/o_ref: (1, tc, tn);  ss_ref: (tc, 2) float32 = [scale, shift].
    x = x_ref[...].astype(jnp.float32)
    scale = ss_ref[:, 0:1]                      # (tc, 1)
    shift = ss_ref[:, 1:2]                      # (tc, 1)
    o_ref[...] = (x * scale + shift).astype(o_ref.dtype)


def _pick_tiles(N, C, cols, itemsize, target_bytes=1 << 20, min_steps=8):
    """Pick (channel_block, spatial_block) for an (N, C, cols) streaming op.

    Targets ~target_bytes per x block (enough to hide the ~0.35us/step
    overhead) while guaranteeing >= min_steps grid steps so the pipeline has
    a steady state and both v7x TensorCores get work.
    """
    sub = 8 * max(1, 4 // itemsize)          # sublane tile: 8 f32, 16 bf16, 32 i8
    row_bytes = cols * itemsize

    if row_bytes * min(C, sub) > target_bytes:
        # Huge feature maps: one sublane-tile of channels, tile the lane axis
        # in multiples of 128 (keeps stores unmasked vst).
        tc = min(C, sub)
        tn = max(128, (target_bytes // (tc * itemsize) // 128) * 128)
        tn = min(tn, cols)
    else:
        # Whole spatial extent fits: tile channels only.
        tn = cols
        tc = target_bytes // max(row_bytes, 1)
        tc = min(tc, C, 512)                 # cap so (tc,128)-padded side block stays small
        if tc < C:
            tc = max(sub, (tc // sub) * sub)

    def steps(tc_, tn_):
        return N * pl.cdiv(C, tc_) * pl.cdiv(cols, tn_)

    # Guarantee enough grid steps for DMA/compute overlap & dual-TC sharding:
    # shrink the channel tile first (keeps the output lane-dense) ...
    while steps(tc, tn) < min_steps and tc > sub:
        tc = max(sub, ((tc // 2) // sub) * sub)
    # ... then split the spatial axis in multiples of 128.
    while steps(tc, tn) < min_steps and tn > 128:
        tn = max(128, ((tn // 2) // 128) * 128)

    return tc, tn


def frozen_batch_norm_2d(x, weight, bias, running_mean, running_var,
                         eps=1e-5, donate_input=False):
    """x: (N, C, H, W); weight/bias/running_mean/running_var: (C,)."""
    N, C, H, W = x.shape
    cols = H * W
    x3 = x.reshape(N, C, cols)

    # Per-channel affine, folded once in fp32 (PyTorch buffers are fp32).
    w32 = weight.astype(jnp.float32)
    b32 = bias.astype(jnp.float32)
    rm32 = running_mean.astype(jnp.float32)
    rv32 = running_var.astype(jnp.float32)
    scale_c = w32 * lax.rsqrt(rv32 + jnp.float32(eps))   # (C,)
    shift_c = b32 - rm32 * scale_c                       # (C,)
    ss = jnp.stack([scale_c, shift_c], axis=1)           # (C, 2) float32

    itemsize = jnp.dtype(x.dtype).itemsize
    tc, tn = _pick_tiles(N, C, cols, itemsize)
    grid = (N, pl.cdiv(C, tc), pl.cdiv(cols, tn))   # spatial axis innermost

    # Explicit VMEM budget from the actual tile footprint:
    #   2 pipeline buffers x (x-in + x-out) + 2 buffers of the lane-padded
    #   (tc,2)->(tc,128) side array + headroom for internal scratch.
    x_block_bytes = tc * tn * itemsize
    ss_block_bytes = tc * 128 * 4
    vmem_bytes = 2 * (2 * x_block_bytes) + 2 * ss_block_bytes + (4 << 20)
    vmem_bytes = int(min(max(vmem_bytes, 8 << 20), 64 << 20))

    cost = pl.CostEstimate(
        flops=2 * N * C * cols,
        transcendentals=0,
        bytes_accessed=2 * N * C * cols * itemsize,
    )

    out3 = pl.pallas_call(
        frozen_bn_kernel,
        out_shape=jax.ShapeDtypeStruct((N, C, cols), x.dtype),
        grid=grid,
        in_specs=[
            pl.BlockSpec((1, tc, tn), lambda n, ci, cj: (n, ci, cj)),
            pl.BlockSpec((tc, 2), lambda n, ci, cj: (ci, 0)),
        ],
        out_specs=pl.BlockSpec((1, tc, tn), lambda n, ci, cj: (n, ci, cj)),
        compiler_params=pltpu.CompilerParams(
            dimension_semantics=("parallel", "parallel", "parallel"),
            vmem_limit_bytes=vmem_bytes),
        cost_estimate=cost,
        # Alias x -> out only when the caller knows the pre-BN activation is
        # dead after this op (saves an HBM output allocation in the backbone).
        input_output_aliases={0: 0} if donate_input else {},
    )(x3, ss)

    return out3.reshape(N, C, H, W)


def frozen_batch_norm_2d_ref(x, weight, bias, running_mean, running_var, eps=1e-5):
    """Pure-JAX reference mirroring the PyTorch forward exactly."""
    w = weight.reshape(1, -1, 1, 1)
    b = bias.reshape(1, -1, 1, 1)
    rv = running_var.reshape(1, -1, 1, 1)
    rm = running_mean.reshape(1, -1, 1, 1)
    scale = w * lax.rsqrt(rv + jnp.float32(eps))
    bias_ = b - rm * scale
    return x * scale + bias_


if __name__ == "__main__":
    key = jax.random.PRNGKey(0)
    N, C, H, W = 2, 4, 16, 16

    x = jax.random.normal(key, (N, C, H, W), dtype=jnp.float32)

    # Module __init__ gives: weight=ones(C), bias=zeros(C),
    # running_mean=zeros(C), running_var=ones(C).  Perturb them
    # deterministically so the affine transform is non-trivial.
    c_idx = jnp.arange(C, dtype=jnp.float32)
    weight = jnp.ones((C,), jnp.float32) + 0.1 * c_idx
    bias = jnp.zeros((C,), jnp.float32) + 0.05 * c_idx
    running_mean = jnp.zeros((C,), jnp.float32) + 0.2 * c_idx
    running_var = jnp.ones((C,), jnp.float32) + 0.3 * c_idx

    out = frozen_batch_norm_2d(x, weight, bias, running_mean, running_var)
    out = jax.block_until_ready(out)

    ref = frozen_batch_norm_2d_ref(x, weight, bias, running_mean, running_var)
    assert out.shape == (N, C, H, W)
    assert out.dtype == x.dtype
    assert jnp.allclose(out, ref.astype(out.dtype), atol=1e-5, rtol=1e-5)

    print("KERNEL_OK")
</pallas_src>

<mosaic_0001>
module attributes {stable_mosaic.version = 11 : i64} {
  func.func @frozen_bn_kernel(%arg0: i32, %arg1: i32, %arg2: i32, %arg3: memref<1x4x128xf32, #tpu.memory_space<vmem>>, %arg4: memref<4x2xf32, #tpu.memory_space<vmem>>, %arg5: memref<1x4x128xf32, #tpu.memory_space<vmem>>) attributes {dimension_semantics = [#tpu.dimension_semantics<parallel>, #tpu.dimension_semantics<parallel>, #tpu.dimension_semantics<parallel>], iteration_bounds = array<i64: 2, 1, 2>, scalar_prefetch = 0 : i64, scratch_operands = 0 : i64, tpu.core_type = #tpu.core_type<tc>, window_params = [{transform_indices = @transform_0, window_bounds = array<i64: 1, 4, 128>}, {transform_indices = @transform_1, window_bounds = array<i64: 4, 2>}, {transform_indices = @transform_2, window_bounds = array<i64: 1, 4, 128>}]} {
    %c0 = arith.constant 0 : index
    %c0_0 = arith.constant 0 : index
    %c0_1 = arith.constant 0 : index
    %0 = vector.load %arg3[%c0, %c0_0, %c0_1] : memref<1x4x128xf32, #tpu.memory_space<vmem>>, vector<1x4x128xf32>
    %c0_2 = arith.constant 0 : index
    %c0_3 = arith.constant 0 : index
    %1 = vector.load %arg4[%c0_2, %c0_3] : memref<4x2xf32, #tpu.memory_space<vmem>>, vector<4x1xf32>
    %c0_4 = arith.constant 0 : index
    %c1 = arith.constant 1 : index
    %2 = vector.load %arg4[%c0_4, %c1] : memref<4x2xf32, #tpu.memory_space<vmem>>, vector<4x1xf32>
    %3 = vector.shape_cast %1 : vector<4x1xf32> to vector<1x4x1xf32>
    %4 = vector.broadcast %3 : vector<1x4x1xf32> to vector<1x4x128xf32>
    %5 = arith.mulf %0, %4 : vector<1x4x128xf32>
    %6 = vector.shape_cast %2 : vector<4x1xf32> to vector<1x4x1xf32>
    %7 = vector.broadcast %6 : vector<1x4x1xf32> to vector<1x4x128xf32>
    %8 = arith.addf %5, %7 : vector<1x4x128xf32>
    %c0_5 = arith.constant 0 : index
    %c0_6 = arith.constant 0 : index
    %c0_7 = arith.constant 0 : index
    %9 = vector.load %arg5[%c0_5, %c0_6, %c0_7] : memref<1x4x128xf32, #tpu.memory_space<vmem>>, vector<1x4x128xf32>
    tpu.vector_store %arg5[%c0_5, %c0_6, %c0_7], %8 {strides = array<i32>} : memref<1x4x128xf32, #tpu.memory_space<vmem>>, vector<1x4x128xf32>,
    return
  }
  func.func @transform_0(%arg0: i32, %arg1: i32, %arg2: i32) -> (i32, i32, i32) {
    %c0_i32 = arith.constant 0 : i32
    return %arg0, %arg1, %arg2 : i32, i32, i32
  }
  func.func @transform_1(%arg0: i32, %arg1: i32, %arg2: i32) -> (i32, i32) {
    %c0_i32 = arith.constant 0 : i32
    %c0_i32_0 = arith.constant 0 : i32
    return %arg1, %c0_i32 : i32, i32
  }
  func.func @transform_2(%arg0: i32, %arg1: i32, %arg2: i32) -> (i32, i32, i32) {
    %c0_i32 = arith.constant 0 : i32
    return %arg0, %arg1, %arg2 : i32, i32, i32
  }
}

</mosaic_0001>

<llo_original>
// kernel: tpu_custom_call.1
$region0: #{tpu_custom_call.1}
  #allocation0 [shape = 'u32[]', space=smem, size = 0x4, offset = 0x4, fixed_abs, tag = 'smem constant byte address 0x4 - core index']
  #allocation1 [shape = 'u32[144,128]{1,0:T(1,128)}', space=vmem, size = 0x12000, scoped, tag = 'internal scratch']
  %s0 = inlined_call_operand.hbm [shape: f32[2,4,256], index: 0, kind: input, shape index: {}]
  %s1 = inlined_call_operand.vmem [shape: f32[4,2], index: 1, kind: input, shape index: {}]
  %s2 = inlined_call_operand.hbm [shape: f32[2,4,256], index: 2, kind: output, shape index: {}]
  %s3 = sld [smem:[#allocation0]]
  $region45: #{tpu_custom_call.1} parent=0
    _
  %s5 = ssub.s32 1, %s3
  %s6 = scalar_select 0, %s5, %s3
  $region1: #{tpu_custom_call.1} parent=0
    #allocation2 [shape = 'u8[4096]{0}', space=vmem, size = 0x1000, scoped, tag = 'input window, operand 0']
    #allocation3 [shape = 's32[2]{0}', space=sflag, size = 0x8, scoped, tag = 'scoped memory for tpu_custom_call.1']
    #allocation4 [shape = 's32[2]{0}', space=sflag, size = 0x8, scoped, tag = 'scoped memory for tpu_custom_call.1']
    #allocation5 [shape = 'u8[4096]{0}', space=vmem, size = 0x1000, scoped, tag = 'output window, operand 0']
    %7 = vsyncpa [#allocation3], 0
    %s8 = scalar_lea.sflag [#allocation3], 1
    %9 = vsyncpa %s8, 0
    %10 = vsyncpa [#allocation4], 0
    %s11 = scalar_lea.sflag [#allocation4], 1
    %12 = vsyncpa %s11, 0
    loop: start=0, step=1, limit=6
    $region2: #{tpu_custom_call.1} parent=1 // loop_pre_header
      _
    $region3: #{tpu_custom_call.1} parent=1 // loop_header
      %s14 = sphi 0, %s18
      %p15 = scmp.ge.s32.totalorder %s14, 6
      %s21 = sphi 0, %s40
      %s22 = sphi 0, %s36
      %s23 = sphi 0, %s32
      %s24 = sphi 0, %s21
      %s25 = sphi 0, %s22
      %s26 = sphi 0, %s23
      %s27 = sphi 0, %s24
      %s28 = sphi 0, %s25
      %s29 = sphi 0, %s26
      %s47 = sphi 0, %s49
      %s50 = sphi 0, %s47
      %s51 = sphi 0, %s50
      %s67 = sphi 0, %s51
      %s73 = sphi 0, %s75
      %s76 = sphi 0, %s73
      %s77 = sphi 0, %s76
      %s93 = sphi 0, %s77
      %s103 = sphi 0, %s105
      %s106 = sphi 0, %s103
      %s107 = sphi 0, %s106
      %s123 = sphi 0, %s107
    $region4: #{tpu_custom_call.1} parent=1 // loop_header_branch
      %17 = sbr.rel (%p15) target = $region8
    $region5: #{tpu_custom_call.1} parent=1 // loop_body
      %s19 = ssub.s32 %s14, 1
      %s20 = ssub.s32 %s14, 2
      %s30 = sadd.s32 1, %s23
      %p31 = scmp.ge.s32.totalorder %s30, 2
      %s32 = scalar_select %p31, 0, %s30
      %s33 = sadd.s32 1, %s22
      %s34 = scalar_select %p31, %s33, %s22
      %p35 = scmp.ge.s32.totalorder %s34, 1
      %s36 = scalar_select %p35, 0, %s34
      %s37 = sadd.s32 1, %s21
      %s38 = scalar_select %p35, %s37, %s21
      %p39 = scmp.ge.s32.totalorder %s38, 2
      %s40 = scalar_select %p39, 0, %s38
      %s41 = ssub.s32 %s21, %s40
      %s42 = ssub.s32 %s22, %s36
      %s43 = sor.u32 %s41, %s42
      %s44 = ssub.s32 %s23, %s32
      %s45 = sor.u32 %s43, %s44
      %p46 = scmp.eq.s32.totalorder %s45, 0
      %s48 = sadd.s32 %s47, 1
      %s49 = scalar_select %p46, %s47, %s48
      %p52 = pneg %p46
      %p53 = scmp.eq.s32.totalorder %s14, 3
      %p54 = por %p52, %p53
      %p55 = scmp.ne.s32.totalorder %s47, %s50
      %p56 = scmp.eq.s32.totalorder %s14, 0
      %p57 = por %p55, %p56
      %p58 = scmp.ne.s32.totalorder %s47, %s50
      %p59 = scmp.eq.s32.totalorder %s19, 3
      %p60 = por %p58, %p59
      %p61 = scmp.ne.s32.totalorder %s50, %s51
      %p62 = scmp.eq.s32.totalorder %s19, 0
      %p63 = por %p61, %p62
      %p64 = scmp.ne.s32.totalorder %s50, %s51
      %p65 = scmp.eq.s32.totalorder %s20, 3
      %p66 = por %p64, %p65
      %p68 = scmp.ne.s32.totalorder %s51, %s67
      %p69 = scmp.eq.s32.totalorder %s20, 0
      %p70 = por %p68, %p69
      %s71 = ssub.s32 %s22, %s36
      %p72 = scmp.eq.s32.totalorder %s71, 0
      %s74 = sadd.s32 %s73, 1
      %s75 = scalar_select %p72, %s73, %s74
      %p78 = pneg %p72
      %p79 = scmp.eq.s32.totalorder %s14, 3
      %p80 = por %p78, %p79
      %p81 = scmp.ne.s32.totalorder %s73, %s76
      %p82 = scmp.eq.s32.totalorder %s14, 0
      %p83 = por %p81, %p82
      %p84 = scmp.ne.s32.totalorder %s73, %s76
      %p85 = scmp.eq.s32.totalorder %s19, 3
      %p86 = por %p84, %p85
      %p87 = scmp.ne.s32.totalorder %s76, %s77
      %p88 = scmp.eq.s32.totalorder %s19, 0
      %p89 = por %p87, %p88
      %p90 = scmp.ne.s32.totalorder %s76, %s77
      %p91 = scmp.eq.s32.totalorder %s20, 3
      %p92 = por %p90, %p91
      %p94 = scmp.ne.s32.totalorder %s77, %s93
      %p95 = scmp.eq.s32.totalorder %s20, 0
      %p96 = por %p94, %p95
      %s97 = ssub.s32 %s21, %s40
      %s98 = ssub.s32 %s22, %s36
      %s99 = sor.u32 %s97, %s98
      %s100 = ssub.s32 %s23, %s32
      %s101 = sor.u32 %s99, %s100
      %p102 = scmp.eq.s32.totalorder %s101, 0
      %s104 = sadd.s32 %s103, 1
      %s105 = scalar_select %p102, %s103, %s104
      %p108 = pneg %p102
      %p109 = scmp.eq.s32.totalorder %s14, 3
      %p110 = por %p108, %p109
      %p111 = scmp.ne.s32.totalorder %s103, %s106
      %p112 = scmp.eq.s32.totalorder %s14, 0
      %p113 = por %p111, %p112
      %p114 = scmp.ne.s32.totalorder %s103, %s106
      %p115 = scmp.eq.s32.totalorder %s19, 3
      %p116 = por %p114, %p115
      %p117 = scmp.ne.s32.totalorder %s106, %s107
      %p118 = scmp.eq.s32.totalorder %s19, 0
      %p119 = por %p117, %p118
      %p120 = scmp.ne.s32.totalorder %s106, %s107
      %p121 = scmp.eq.s32.totalorder %s20, 3
      %p122 = por %p120, %p121
      %p124 = scmp.ne.s32.totalorder %s107, %s123
      %p125 = scmp.eq.s32.totalorder %s20, 0
      %p126 = por %p124, %p125
      %p127 = scmp.le.s32.totalorder 1, %s14
      %p128 = scmp.lt.s32.totalorder %s14, 5
      %p129 = pnand %p127, %p128
      %p130 = pneg %p129
      // Predicated region
      $region9: #{tpu_custom_call.1} parent=5 // pred_check
        _
      $region10: #{tpu_custom_call.1} parent=5 // pred_check_branch
        %132 = sbr.rel (%p129) target = $region12
      $region11: #{tpu_custom_call.1} parent=5 // pred_region
        %s133 = ssub.s32 %s14, 1
        // Predicated region
        $region13: #{tpu_custom_call.1} parent=11 // pred_check
          %p134 = pneg %p89
        $region14: #{tpu_custom_call.1} parent=11 // pred_check_branch
          %136 = sbr.rel (%p134) target = $region16
        $region15: #{tpu_custom_call.1} parent=11 // pred_region
          %p137 = scmp.lt.s32.totalorder %s25, 0
          %s138 = scalar_select %p137, %s25, 0
          %s139 = smul.addr %s138, 4
          %s140 = scalar_lea.vmem %s1, %s139
        $region16: #{tpu_custom_call.1} parent=11 // pred_fallthru
          _
      $region12: #{tpu_custom_call.1} parent=5 // pred_fallthru
        _
      %p141 = scmp.lt.s32.totalorder %s14, 4
      // Predicated region
      $region17: #{tpu_custom_call.1} parent=5 // pred_check
        %p142 = pneg %p141
      $region18: #{tpu_custom_call.1} parent=5 // pred_check_branch
        %144 = sbr.rel (%p142) target = $region20
      $region19: #{tpu_custom_call.1} parent=5 // pred_region
        // Predicated region
        $region21: #{tpu_custom_call.1} parent=19 // pred_check
          %p145 = pneg %p57
        $region22: #{tpu_custom_call.1} parent=19 // pred_check_branch
          %147 = sbr.rel (%p145) target = $region24
        $region23: #{tpu_custom_call.1} parent=19 // pred_region
          %s148 = sand.u32 %s47, 1
          %s149 = scalar_lea.sflag [#allocation3], %s148
          %s150 = sand.u32 %s47, 1
          %s151 = smul.addr %s150, 4
          %s152 = scalar_lea.vmem [#allocation2], %s151
          %s154 = ssub.s32 64, 64
          %155 = vsyncadd %s149, %s154
          %s156 = smul.addr %s22, 2
          %s157 = sadd.s32 %s23, %s156
          %s158 = smul.addr %s21, 2
          %s159 = sadd.s32 %s157, %s158
          %s160 = smul.addr %s159, 64
          %s161 = scalar_lea.hbm %s0, %s160
          %s163 = sshll.u32 %s152, 4
          %s164 = int_to_ptr.vmem [resolvable:$true] %s163
          %166 = dma.hbm_to_vmem [thread:$0]  %s161, 64, %s164, %s149
        $region24: #{tpu_custom_call.1} parent=19 // pred_fallthru
          _
      $region20: #{tpu_custom_call.1} parent=5 // pred_fallthru
        _
      %p167 = scmp.le.s32.totalorder 1, %s14
      %p168 = scmp.lt.s32.totalorder %s14, 5
      %p169 = pnand %p167, %p168
      %p170 = pneg %p169
      // Predicated region
      $region25: #{tpu_custom_call.1} parent=5 // pred_check
        _
      $region26: #{tpu_custom_call.1} parent=5 // pred_check_branch
        %172 = sbr.rel (%p169) target = $region28
      $region27: #{tpu_custom_call.1} parent=5 // pred_region
        %s173 = ssub.s32 %s14, 1
        %s174 = sand.u32 %s50, 1
        %s175 = scalar_lea.sflag [#allocation3], %s174
        %s176 = sand.u32 %s50, 1
        %s177 = smul.addr %s176, 4
        %s178 = scalar_lea.vmem [#allocation2], %s177
        // Predicated region
        $region29: #{tpu_custom_call.1} parent=27 // pred_check
          %p179 = pneg %p63
        $region30: #{tpu_custom_call.1} parent=27 // pred_check_branch
          %181 = sbr.rel (%p179) target = $region32
        $region31: #{tpu_custom_call.1} parent=27 // pred_region
          %182 = dma.done %s175, 64
        $region32: #{tpu_custom_call.1} parent=27 // pred_fallthru
          _
        %s183 = sand.u32 %s50, 1
        %s184 = scalar_lea.sflag [#allocation3], %s183
        %s185 = sand.u32 %s50, 1
        %s186 = smul.addr %s185, 4
        %s187 = scalar_lea.vmem [#allocation2], %s186
        %p188 = pneg %p63
        %p189 = pneg %p60
        %p190 = scmp.lt.s32.totalorder %s25, 0
        %s191 = scalar_select %p190, %s25, 0
        %s192 = smul.addr %s191, 4
        %s193 = scalar_lea.vmem %s1, %s192
        %p194 = pneg %p89
        %p195 = pneg %p86
        %p196 = pneg %p119
        %p197 = pneg %p116
        %s198 = sand.u32 %s106, 1
        %s199 = scalar_lea.sflag [#allocation4], %s198
        %s200 = sand.u32 %s106, 1
        %s201 = smul.addr %s200, 4
        %s202 = scalar_lea.vmem [#allocation5], %s201
        %p203 = scmp.lt.s32.totalorder %s25, 0
        %s204 = scalar_select %p203, %s25, 0
        %s205 = smul.addr %s204, 4
        %s206 = scalar_lea.vmem %s1, %s205
        %v207 = vld [vmem:[%s178] sm:$0xf]
        %v208 = vld [vmem:[%s206] sm:$0xf]
        %210 = vset.pattern.permute.xlu0 0
        %211 = vperm.xlu0 %210, %v208
        %v212 = vpop.permute.xlu0 %211
        %v214 = vmul.f32 %v207, %v212
        %215 = vset.pattern.permute.xlu0 1
        %216 = vperm.xlu0 %215, %v208
        %v217 = vpop.permute.xlu0 %216
        %v219 = vadd.f32 %v214, %v217
        %220 = vst [vmem:[%s202] sm:$0xf] %v219
        %s221 = sand.u32 %s106, 1
        %s222 = scalar_lea.sflag [#allocation4], %s221
        %s223 = sand.u32 %s106, 1
        %s224 = smul.addr %s223, 4
        %s225 = scalar_lea.vmem [#allocation5], %s224
        // Predicated region
        $region33: #{tpu_custom_call.1} parent=27 // pred_check
          %p226 = pneg %p116
        $region34: #{tpu_custom_call.1} parent=27 // pred_check_branch
          %228 = sbr.rel (%p226) target = $region36
        $region35: #{tpu_custom_call.1} parent=27 // pred_region
          %s230 = ssub.s32 64, 64
          %231 = vsyncadd %s222, %s230
          %s232 = smul.addr %s25, 2
          %s233 = sadd.s32 %s26, %s232
          %s234 = smul.addr %s24, 2
          %s235 = sadd.s32 %s233, %s234
          %s236 = smul.addr %s235, 64
          %s237 = scalar_lea.hbm %s2, %s236
          %s239 = sshll.u32 %s225, 4
          %s240 = int_to_ptr.vmem [resolvable:$true] %s239
          %242 = dma.vmem_to_hbm [thread:$0]  %s240, 64, %s237, %s222
        $region36: #{tpu_custom_call.1} parent=27 // pred_fallthru
          _
      $region28: #{tpu_custom_call.1} parent=5 // pred_fallthru
        _
      %p243 = scmp.le.s32.totalorder 2, %s14
      // Predicated region
      $region37: #{tpu_custom_call.1} parent=5 // pred_check
        %p244 = pneg %p243
      $region38: #{tpu_custom_call.1} parent=5 // pred_check_branch
        %246 = sbr.rel (%p244) target = $region40
      $region39: #{tpu_custom_call.1} parent=5 // pred_region
        %s247 = ssub.s32 %s14, 2
        // Predicated region
        $region41: #{tpu_custom_call.1} parent=39 // pred_check
          %p248 = pneg %p122
        $region42: #{tpu_custom_call.1} parent=39 // pred_check_branch
          %250 = sbr.rel (%p248) target = $region44
        $region43: #{tpu_custom_call.1} parent=39 // pred_region
          %s251 = sand.u32 %s107, 1
          %s252 = scalar_lea.sflag [#allocation4], %s251
          %s253 = sand.u32 %s107, 1
          %s254 = smul.addr %s253, 4
          %s255 = scalar_lea.vmem [#allocation5], %s254
          %256 = dma.done %s252, 64
        $region44: #{tpu_custom_call.1} parent=39 // pred_fallthru
          _
      $region40: #{tpu_custom_call.1} parent=5 // pred_fallthru
        _
    $region6: #{tpu_custom_call.1} parent=1 // loop_footer
      %s18 = sadd.s32 1, %s14
    $region7: #{tpu_custom_call.1} parent=1 // loop_footer_branch
      %13 = sbr.rel target = $region3
    $region8: #{tpu_custom_call.1} parent=1 // loop_exit
      _
    %257 = vsyncpa [#allocation3], 1
    %s258 = scalar_lea.sflag [#allocation3], 1
    %259 = vsyncpa %s258, 1
    %260 = vsyncpa [#allocation4], 1
    %s261 = scalar_lea.sflag [#allocation4], 1
    %262 = vsyncpa %s261, 1

</llo_original>
